<compile_context>
chip_gen: v7x
topology: tpu7x:2x2x1
jax: 0.10.0
libtpu: 0.0.40
codegen_flags: <defaults>
</compile_context>

<pallas_src>
import functools

import jax
import jax.numpy as jnp
from jax import lax
from jax.experimental import pallas as pl
from jax.experimental.pallas import tpu as pltpu


def _hardswish6(x):
    # 6 * Hardswish(x) = x * relu6(x + 3).  The missing 1/6 is folded into the
    # depthwise weights (after act #1) and into w2 (after act #2) on the host.
    return x * jnp.clip(x + 3.0, 0.0, 6.0)


def _hardswish(x):
    # Exact torch.nn.Hardswish, used only by the pure-JAX reference.
    return x * jnp.clip(x + 3.0, 0.0, 6.0) * (1.0 / 6.0)


def _tpu_generation():
    try:
        kind = jax.devices()[0].device_kind.lower()
    except Exception:
        return 6
    for g in (7, 6, 5, 4, 3, 2):
        if ("v%d" % g) in kind or ("%dx" % g) in kind:
            return g
    return 6


def _vmem_capacity_bytes():
    # Prefer the Pallas hardware query; fall back to a per-generation table.
    try:
        info = pltpu.get_tpu_info()
        cap = getattr(info, "vmem_capacity_bytes", None)
        if cap:
            return int(cap)
    except Exception:
        pass
    return (64 << 20) if _tpu_generation() >= 7 else (128 << 20)


def _pick_batch_tile(B, N, C, hid, c_out, live_budget, max_rows=4096):
    """Largest batch tile whose VMEM live set fits; prefer >= 2 grid steps (v7x)."""
    weight_bytes = 2 * C * hid + 2 * hid * c_out + 4 * (10 * hid + c_out)

    def live_bytes(bt):
        rows = bt * N
        # 2x double-buffered f32 x block (8C) + 2x f32 out block + f32 fc2 result
        # (12 c_out) + ~7 simultaneously live (rows, hid) f32 temporaries (28 hid)
        # + boundary-mask block, plus resident weights.
        return rows * (8 * C + 12 * c_out + 28 * hid + 32) + weight_bytes

    divisors = [d for d in range(1, B + 1) if B % d == 0]
    # (8,128) rule: block rows must be a multiple of 8 unless the block covers the
    # whole B*N axis (BT == B).
    aligned = [d for d in divisors if (d * N) % 8 == 0 or d == B]

    def fits(d):
        return live_bytes(d) <= live_budget and d * N <= max(max_rows, N)

    preferred = [d for d in aligned if fits(d) and (B // d >= 2 or B == 1)]
    if preferred:
        return max(preferred)
    fallback = [d for d in aligned if fits(d)]
    if fallback:
        return max(fallback)
    return min(aligned)


def _irb_kernel(x_ref, m_ref, w1_ref, b1_ref, wdw_ref, bdw_ref, w2_ref, b2_ref,
                o_ref, *, W):
    """Processes BT images per grid step.

    x_ref  : (M, C)  f32   input tokens, channels-last (M = BT*H*W)
    m_ref  : (M, 4)  f32   {0,1} boundary masks: [row_up_ok, row_dn_ok, col_l_ok, col_r_ok]
    w1_ref : (C, hid) bf16 fc1 (1x1 conv) weight,   b1_ref : (1, hid) f32
    wdw_ref: (9, hid) f32  depthwise 3x3 weights / 6, tap k = (dy+1)*3 + (dx+1)
    bdw_ref: (1, hid) f32
    w2_ref : (hid, Cout) bf16 fc2 weight / 6,       b2_ref : (1, Cout) f32
    o_ref  : (M, Cout)
    """
    M = x_ref.shape[0]

    # ---- fc1 (1x1 conv) + (6*Hardswish): one MXU matmul, bf16 operands, f32 acc.
    x = x_ref[...].astype(jnp.bfloat16)
    h = jnp.dot(x, w1_ref[...], preferred_element_type=jnp.float32) + b1_ref[...]
    h = _hardswish6(h)                                             # (M, hid) f32

    # ---- 3x3 depthwise conv (SAME padding) as shifted taps on the flat map.
    m_u = m_ref[:, 0:1]   # dy = -1 tap has a valid source row
    m_d = m_ref[:, 1:2]   # dy = +1 tap has a valid source row
    m_l = m_ref[:, 2:3]   # dx = -1 tap has a valid source column
    m_r = m_ref[:, 3:4]   # dx = +1 tap has a valid source column
    wdw = wdw_ref[...]                                             # (9, hid) f32

    # Row-shifted hidden maps (dy = -1 / +1).  pltpu.roll uses jnp.roll semantics
    # (non-negative shifts); the masks zero rows whose source lies outside the
    # image and also kill the cross-image wrap of the roll.
    h_up = pltpu.roll(h, W, axis=0) * m_u                          # source row r-1
    h_dn = pltpu.roll(h, M - W, axis=0) * m_d                      # source row r+1

    # Per-column-offset weighted sums over dy (tap k = (dy+1)*3 + (dx+1)),
    # ordered to keep the number of simultaneously live (M, hid) temporaries low.
    s_l = h_up * wdw[0:1] + h * wdw[3:4] + h_dn * wdw[6:7]         # dx = -1
    s_r = h_up * wdw[2:3] + h * wdw[5:6] + h_dn * wdw[8:9]         # dx = +1
    acc = bdw_ref[...] + h * wdw[4:5] + h_up * wdw[1:2] + h_dn * wdw[7:8]
    # Column shifts via sublane rolls; column / cross-image wrap masked.
    acc = (acc
           + pltpu.roll(s_l, 1, axis=0) * m_l
           + pltpu.roll(s_r, M - 1, axis=0) * m_r)
    g = _hardswish6(acc)                                           # (M, hid) f32

    # ---- fc2 (1x1 conv).  Dropout(p=0) is identity.
    out = jnp.dot(g.astype(jnp.bfloat16), w2_ref[...],
                  preferred_element_type=jnp.float32) + b2_ref[...]
    o_ref[...] = out.astype(o_ref.dtype)


def irb_forward(x, H, W, params, *, batch_tile=None):
    """x: (B, N, C) float32 with N == H*W. Returns (B, N, C_out)."""
    B, N, C = x.shape
    assert N == H * W

    # Per-generation VMEM sizing: raise the scoped limit well above the 16/32 MiB
    # defaults (v5e/v6e have 128 MiB physical, v7x 64 MiB per TC) and budget the
    # kernel live set at half of it to leave headroom for compiler temporaries.
    vmem_cap = _vmem_capacity_bytes()
    vmem_limit = (vmem_cap * 3) // 4
    live_budget = vmem_limit // 2

    # Host-side parameter prep: fold the two Hardswish 1/6 factors into wdw / w2
    # (the depthwise conv and fc2 are linear in their input; biases unchanged),
    # and pre-cast the matmul weights to bf16 (halves weight DMA + resident VMEM,
    # removes per-step re-casts).  wdw / biases stay f32 (VPU math is f32).
    w1 = params["w1"].astype(jnp.bfloat16)
    b1 = params["b1"].astype(jnp.float32)
    wdw = (params["wdw"] * (1.0 / 6.0)).astype(jnp.float32)
    bdw = params["bdw"].astype(jnp.float32)
    w2 = (params["w2"] * (1.0 / 6.0)).astype(jnp.bfloat16)
    b2 = params["b2"].astype(jnp.float32)
    hid = w1.shape[1]
    c_out = w2.shape[1]

    if batch_tile is None:
        batch_tile = _pick_batch_tile(B, N, C, hid, c_out, live_budget)
    BT = batch_tile
    assert B % BT == 0
    M = BT * N
    assert M % 8 == 0 or BT == B, "block rows must stay sublane-aligned"

    # Boundary masks, computed once on the host (identical for every grid step,
    # constant index_map keeps them VMEM-resident): for destination position
    # n = b*N + r*W + c inside the block, is the source of each shifted tap valid?
    idx = jnp.arange(M, dtype=jnp.int32)
    col = idx % W
    pos = idx % N
    masks = jnp.stack([pos >= W,            # dy = -1 source row exists
                       pos < N - W,         # dy = +1 source row exists
                       col >= 1,            # dx = -1 source column exists
                       col < W - 1],        # dx = +1 source column exists
                      axis=1).astype(jnp.float32)                  # (M, 4)

    flops = 2 * B * N * (C * hid + hid * c_out) + 30 * B * N * hid
    bytes_accessed = 4 * (B * N * (C + c_out) + 10 * hid + c_out + 4 * M) \
        + 2 * (C * hid + hid * c_out)

    kernel = functools.partial(_irb_kernel, W=W)

    out2d = pl.pallas_call(
        kernel,
        out_shape=jax.ShapeDtypeStruct((B * N, c_out), x.dtype),
        grid=(B // BT,),
        in_specs=[
            pl.BlockSpec((M, C), lambda b: (b, 0)),
            pl.BlockSpec((M, 4), lambda b: (0, 0)),
            pl.BlockSpec((C, hid), lambda b: (0, 0)),
            pl.BlockSpec((1, hid), lambda b: (0, 0)),
            pl.BlockSpec((9, hid), lambda b: (0, 0)),
            pl.BlockSpec((1, hid), lambda b: (0, 0)),
            pl.BlockSpec((hid, c_out), lambda b: (0, 0)),
            pl.BlockSpec((1, c_out), lambda b: (0, 0)),
        ],
        out_specs=pl.BlockSpec((M, c_out), lambda b: (b, 0)),
        compiler_params=pltpu.CompilerParams(
            dimension_semantics=("parallel",),
            vmem_limit_bytes=int(vmem_limit)),
        cost_estimate=pl.CostEstimate(flops=flops, transcendentals=0,
                                      bytes_accessed=bytes_accessed),
    )(x.reshape(B * N, C), masks, w1, b1, wdw, bdw, w2, b2)
    return out2d.reshape(B, N, c_out)


def irb_reference(x, H, W, params):
    """Pure-JAX reference (same math as the PyTorch module, channels-last, f32)."""
    B, N, C = x.shape
    w1, b1, wdw, bdw, w2, b2 = (params["w1"], params["b1"], params["wdw"],
                                params["bdw"], params["w2"], params["b2"])
    hid = w1.shape[1]
    xi = x.reshape(B, H, W, C)
    h = _hardswish(jnp.einsum("bhwc,cd->bhwd", xi, w1) + b1[0])
    dw_k = wdw.reshape(3, 3, 1, hid)                               # HWIO, I=1 (depthwise)
    g = lax.conv_general_dilated(
        h, dw_k, window_strides=(1, 1), padding="SAME",
        dimension_numbers=("NHWC", "HWIO", "NHWC"),
        feature_group_count=hid) + bdw[0]
    g = _hardswish(g)
    out = jnp.einsum("bhwd,de->bhwe", g, w2) + b2[0]
    return out.reshape(B, N, -1)


if __name__ == "__main__":
    # Small shapes consistent with the module: in_features=C, hidden=HID, out=C.
    B, H, W = 2, 8, 8
    N = H * W
    C, HID = 16, 32

    key = jax.random.PRNGKey(0)
    k = jax.random.split(key, 7)
    x = jax.random.normal(k[0], (B, N, C), jnp.float32)

    params = {
        # fc1: Conv2d(C, HID, 1) -> weight (HID, C, 1, 1) stored here as (C, HID)
        "w1": 0.2 * jax.random.normal(k[1], (C, HID), jnp.float32),
        "b1": 0.1 * jax.random.normal(k[2], (1, HID), jnp.float32),
        # depthwise Conv2d(HID, HID, 3, groups=HID) -> weight (HID,1,3,3) stored as (9, HID)
        "wdw": 0.2 * jax.random.normal(k[3], (9, HID), jnp.float32),
        "bdw": 0.1 * jax.random.normal(k[4], (1, HID), jnp.float32),
        # fc2: Conv2d(HID, C, 1) -> weight (C, HID, 1, 1) stored here as (HID, C)
        "w2": 0.2 * jax.random.normal(k[5], (HID, C), jnp.float32),
        "b2": 0.1 * jax.random.normal(k[6], (1, C), jnp.float32),
    }

    out = jax.block_until_ready(irb_forward(x, H, W, params))
    ref = jax.block_until_ready(irb_reference(x, H, W, params))

    assert out.shape == (B, N, C)
    # bf16 MXU operands (f32 accumulation) vs. the all-f32 reference.
    assert jnp.allclose(out, ref, atol=3e-2, rtol=3e-2), "mismatch vs reference"

    print("KERNEL_OK")
</pallas_src>

<mosaic_0001>
module attributes {stable_mosaic.version = 11 : i64} {
  func.func @_irb_kernel(%arg0: i32, %arg1: memref<64x16xf32, #tpu.memory_space<vmem>>, %arg2: memref<64x4xf32, #tpu.memory_space<vmem>>, %arg3: memref<16x32xbf16, #tpu.memory_space<vmem>>, %arg4: memref<1x32xf32, #tpu.memory_space<vmem>>, %arg5: memref<9x32xf32, #tpu.memory_space<vmem>>, %arg6: memref<1x32xf32, #tpu.memory_space<vmem>>, %arg7: memref<32x16xbf16, #tpu.memory_space<vmem>>, %arg8: memref<1x16xf32, #tpu.memory_space<vmem>>, %arg9: memref<64x16xf32, #tpu.memory_space<vmem>>) attributes {dimension_semantics = [#tpu.dimension_semantics<parallel>], iteration_bounds = array<i64: 2>, scalar_prefetch = 0 : i64, scratch_operands = 0 : i64, tpu.core_type = #tpu.core_type<tc>, window_params = [{transform_indices = @transform_0, window_bounds = array<i64: 64, 16>}, {pipeline_mode = #tpu.pipeline_mode<synchronous>, transform_indices = @transform_1, window_bounds = array<i64: 64, 4>}, {pipeline_mode = #tpu.pipeline_mode<synchronous>, transform_indices = @transform_2, window_bounds = array<i64: 16, 32>}, {pipeline_mode = #tpu.pipeline_mode<synchronous>, transform_indices = @transform_3, window_bounds = array<i64: 1, 32>}, {pipeline_mode = #tpu.pipeline_mode<synchronous>, transform_indices = @transform_4, window_bounds = array<i64: 9, 32>}, {pipeline_mode = #tpu.pipeline_mode<synchronous>, transform_indices = @transform_5, window_bounds = array<i64: 1, 32>}, {pipeline_mode = #tpu.pipeline_mode<synchronous>, transform_indices = @transform_6, window_bounds = array<i64: 32, 16>}, {pipeline_mode = #tpu.pipeline_mode<synchronous>, transform_indices = @transform_7, window_bounds = array<i64: 1, 16>}, {transform_indices = @transform_8, window_bounds = array<i64: 64, 16>}]} {
    %c0 = arith.constant 0 : index
    %c0_0 = arith.constant 0 : index
    %0 = vector.load %arg1[%c0, %c0_0] : memref<64x16xf32, #tpu.memory_space<vmem>>, vector<64x16xf32>
    %1 = arith.truncf %0 : vector<64x16xf32> to vector<64x16xbf16>
    %c0_1 = arith.constant 0 : index
    %c0_2 = arith.constant 0 : index
    %2 = vector.load %arg3[%c0_1, %c0_2] : memref<16x32xbf16, #tpu.memory_space<vmem>>, vector<16x32xbf16>
    %cst = arith.constant dense<0.000000e+00> : vector<64x32xf32>
    %3 = tpu.matmul %1, %2, %cst {dimension_numbers = #tpu.dot_dimension_numbers<[1], [0], [0], [1], [0, 0, 1, 1], [], []>} : vector<64x16xbf16>, vector<16x32xbf16>, vector<64x32xf32> -> vector<64x32xf32>
    %c0_3 = arith.constant 0 : index
    %c0_4 = arith.constant 0 : index
    %4 = vector.load %arg4[%c0_3, %c0_4] : memref<1x32xf32, #tpu.memory_space<vmem>>, vector<1x32xf32>
    %5 = vector.broadcast %4 : vector<1x32xf32> to vector<64x32xf32>
    %6 = arith.addf %3, %5 : vector<64x32xf32>
    %cst_5 = arith.constant 3.000000e+00 : f32
    %7 = vector.broadcast %cst_5 : f32 to vector<64x32xf32>
    %8 = arith.addf %6, %7 : vector<64x32xf32>
    %cst_6 = arith.constant 0.000000e+00 : f32
    %cst_7 = arith.constant 6.000000e+00 : f32
    %9 = vector.broadcast %cst_6 : f32 to vector<64x32xf32>
    %10 = arith.maximumf %9, %8 : vector<64x32xf32>
    %11 = vector.broadcast %cst_7 : f32 to vector<64x32xf32>
    %12 = arith.minimumf %11, %10 : vector<64x32xf32>
    %13 = arith.mulf %6, %12 : vector<64x32xf32>
    %c0_8 = arith.constant 0 : index
    %c0_9 = arith.constant 0 : index
    %14 = vector.load %arg2[%c0_8, %c0_9] : memref<64x4xf32, #tpu.memory_space<vmem>>, vector<64x1xf32>
    %c0_10 = arith.constant 0 : index
    %c1 = arith.constant 1 : index
    %15 = vector.load %arg2[%c0_10, %c1] : memref<64x4xf32, #tpu.memory_space<vmem>>, vector<64x1xf32>
    %c0_11 = arith.constant 0 : index
    %c2 = arith.constant 2 : index
    %16 = vector.load %arg2[%c0_11, %c2] : memref<64x4xf32, #tpu.memory_space<vmem>>, vector<64x1xf32>
    %c0_12 = arith.constant 0 : index
    %c3 = arith.constant 3 : index
    %17 = vector.load %arg2[%c0_12, %c3] : memref<64x4xf32, #tpu.memory_space<vmem>>, vector<64x1xf32>
    %c0_13 = arith.constant 0 : index
    %c0_14 = arith.constant 0 : index
    %18 = vector.load %arg5[%c0_13, %c0_14] : memref<9x32xf32, #tpu.memory_space<vmem>>, vector<9x32xf32>
    %c8_i32 = arith.constant 8 : i32
    %19 = tpu.dynamic_rotate %13 by %c8_i32 dim 0 : vector<64x32xf32>, i32 -> vector<64x32xf32>
    %20 = vector.broadcast %14 : vector<64x1xf32> to vector<64x32xf32>
    %21 = arith.mulf %19, %20 : vector<64x32xf32>
    %c56_i32 = arith.constant 56 : i32
    %22 = tpu.dynamic_rotate %13 by %c56_i32 dim 0 : vector<64x32xf32>, i32 -> vector<64x32xf32>
    %23 = vector.broadcast %15 : vector<64x1xf32> to vector<64x32xf32>
    %24 = arith.mulf %22, %23 : vector<64x32xf32>
    %25 = vector.extract_strided_slice %18 {offsets = [0, 0], sizes = [1, 32], strides = [1, 1]} : vector<9x32xf32> to vector<1x32xf32>
    %26 = vector.broadcast %25 : vector<1x32xf32> to vector<64x32xf32>
    %27 = arith.mulf %21, %26 : vector<64x32xf32>
    %28 = vector.extract_strided_slice %18 {offsets = [3, 0], sizes = [1, 32], strides = [1, 1]} : vector<9x32xf32> to vector<1x32xf32>
    %29 = vector.broadcast %28 : vector<1x32xf32> to vector<64x32xf32>
    %30 = arith.mulf %13, %29 : vector<64x32xf32>
    %31 = arith.addf %27, %30 : vector<64x32xf32>
    %32 = vector.extract_strided_slice %18 {offsets = [6, 0], sizes = [1, 32], strides = [1, 1]} : vector<9x32xf32> to vector<1x32xf32>
    %33 = vector.broadcast %32 : vector<1x32xf32> to vector<64x32xf32>
    %34 = arith.mulf %24, %33 : vector<64x32xf32>
    %35 = arith.addf %31, %34 : vector<64x32xf32>
    %36 = vector.extract_strided_slice %18 {offsets = [2, 0], sizes = [1, 32], strides = [1, 1]} : vector<9x32xf32> to vector<1x32xf32>
    %37 = vector.broadcast %36 : vector<1x32xf32> to vector<64x32xf32>
    %38 = arith.mulf %21, %37 : vector<64x32xf32>
    %39 = vector.extract_strided_slice %18 {offsets = [5, 0], sizes = [1, 32], strides = [1, 1]} : vector<9x32xf32> to vector<1x32xf32>
    %40 = vector.broadcast %39 : vector<1x32xf32> to vector<64x32xf32>
    %41 = arith.mulf %13, %40 : vector<64x32xf32>
    %42 = arith.addf %38, %41 : vector<64x32xf32>
    %43 = vector.extract_strided_slice %18 {offsets = [8, 0], sizes = [1, 32], strides = [1, 1]} : vector<9x32xf32> to vector<1x32xf32>
    %44 = vector.broadcast %43 : vector<1x32xf32> to vector<64x32xf32>
    %45 = arith.mulf %24, %44 : vector<64x32xf32>
    %46 = arith.addf %42, %45 : vector<64x32xf32>
    %c0_15 = arith.constant 0 : index
    %c0_16 = arith.constant 0 : index
    %47 = vector.load %arg6[%c0_15, %c0_16] : memref<1x32xf32, #tpu.memory_space<vmem>>, vector<1x32xf32>
    %48 = vector.extract_strided_slice %18 {offsets = [4, 0], sizes = [1, 32], strides = [1, 1]} : vector<9x32xf32> to vector<1x32xf32>
    %49 = vector.broadcast %48 : vector<1x32xf32> to vector<64x32xf32>
    %50 = arith.mulf %13, %49 : vector<64x32xf32>
    %51 = vector.broadcast %47 : vector<1x32xf32> to vector<64x32xf32>
    %52 = arith.addf %51, %50 : vector<64x32xf32>
    %53 = vector.extract_strided_slice %18 {offsets = [1, 0], sizes = [1, 32], strides = [1, 1]} : vector<9x32xf32> to vector<1x32xf32>
    %54 = vector.broadcast %53 : vector<1x32xf32> to vector<64x32xf32>
    %55 = arith.mulf %21, %54 : vector<64x32xf32>
    %56 = arith.addf %52, %55 : vector<64x32xf32>
    %57 = vector.extract_strided_slice %18 {offsets = [7, 0], sizes = [1, 32], strides = [1, 1]} : vector<9x32xf32> to vector<1x32xf32>
    %58 = vector.broadcast %57 : vector<1x32xf32> to vector<64x32xf32>
    %59 = arith.mulf %24, %58 : vector<64x32xf32>
    %60 = arith.addf %56, %59 : vector<64x32xf32>
    %c1_i32 = arith.constant 1 : i32
    %61 = tpu.dynamic_rotate %35 by %c1_i32 dim 0 : vector<64x32xf32>, i32 -> vector<64x32xf32>
    %62 = vector.broadcast %16 : vector<64x1xf32> to vector<64x32xf32>
    %63 = arith.mulf %61, %62 : vector<64x32xf32>
    %64 = arith.addf %60, %63 : vector<64x32xf32>
    %c63_i32 = arith.constant 63 : i32
    %65 = tpu.dynamic_rotate %46 by %c63_i32 dim 0 : vector<64x32xf32>, i32 -> vector<64x32xf32>
    %66 = vector.broadcast %17 : vector<64x1xf32> to vector<64x32xf32>
    %67 = arith.mulf %65, %66 : vector<64x32xf32>
    %68 = arith.addf %64, %67 : vector<64x32xf32>
    %cst_17 = arith.constant 3.000000e+00 : f32
    %69 = vector.broadcast %cst_17 : f32 to vector<64x32xf32>
    %70 = arith.addf %68, %69 : vector<64x32xf32>
    %cst_18 = arith.constant 0.000000e+00 : f32
    %cst_19 = arith.constant 6.000000e+00 : f32
    %71 = vector.broadcast %cst_18 : f32 to vector<64x32xf32>
    %72 = arith.maximumf %71, %70 : vector<64x32xf32>
    %73 = vector.broadcast %cst_19 : f32 to vector<64x32xf32>
    %74 = arith.minimumf %73, %72 : vector<64x32xf32>
    %75 = arith.mulf %68, %74 : vector<64x32xf32>
    %76 = arith.truncf %75 : vector<64x32xf32> to vector<64x32xbf16>
    %c0_20 = arith.constant 0 : index
    %c0_21 = arith.constant 0 : index
    %77 = vector.load %arg7[%c0_20, %c0_21] : memref<32x16xbf16, #tpu.memory_space<vmem>>, vector<32x16xbf16>
    %cst_22 = arith.constant dense<0.000000e+00> : vector<64x16xf32>
    %78 = tpu.matmul %76, %77, %cst_22 {dimension_numbers = #tpu.dot_dimension_numbers<[1], [0], [0], [1], [0, 0, 1, 1], [], []>} : vector<64x32xbf16>, vector<32x16xbf16>, vector<64x16xf32> -> vector<64x16xf32>
    %c0_23 = arith.constant 0 : index
    %c0_24 = arith.constant 0 : index
    %79 = vector.load %arg8[%c0_23, %c0_24] : memref<1x16xf32, #tpu.memory_space<vmem>>, vector<1x16xf32>
    %80 = vector.broadcast %79 : vector<1x16xf32> to vector<64x16xf32>
    %81 = arith.addf %78, %80 : vector<64x16xf32>
    %c0_25 = arith.constant 0 : index
    %c0_26 = arith.constant 0 : index
    %82 = vector.load %arg9[%c0_25, %c0_26] : memref<64x16xf32, #tpu.memory_space<vmem>>, vector<64x16xf32>
    tpu.vector_store %arg9[%c0_25, %c0_26], %81 {strides = array<i32>} : memref<64x16xf32, #tpu.memory_space<vmem>>, vector<64x16xf32>,
    return
  }
  func.func @transform_0(%arg0: i32) -> (i32, i32) {
    %c0_i32 = arith.constant 0 : i32
    %c0_i32_0 = arith.constant 0 : i32
    return %arg0, %c0_i32 : i32, i32
  }
  func.func @transform_1(%arg0: i32) -> (i32, i32) {
    %c0_i32 = arith.constant 0 : i32
    %c0_i32_0 = arith.constant 0 : i32
    %c0_i32_1 = arith.constant 0 : i32
    return %c0_i32, %c0_i32_0 : i32, i32
  }
  func.func @transform_2(%arg0: i32) -> (i32, i32) {
    %c0_i32 = arith.constant 0 : i32
    %c0_i32_0 = arith.constant 0 : i32
    %c0_i32_1 = arith.constant 0 : i32
    return %c0_i32, %c0_i32_0 : i32, i32
  }
  func.func @transform_3(%arg0: i32) -> (i32, i32) {
    %c0_i32 = arith.constant 0 : i32
    %c0_i32_0 = arith.constant 0 : i32
    %c0_i32_1 = arith.constant 0 : i32
    return %c0_i32, %c0_i32_0 : i32, i32
  }
  func.func @transform_4(%arg0: i32) -> (i32, i32) {
    %c0_i32 = arith.constant 0 : i32
    %c0_i32_0 = arith.constant 0 : i32
    %c0_i32_1 = arith.constant 0 : i32
    return %c0_i32, %c0_i32_0 : i32, i32
  }
  func.func @transform_5(%arg0: i32) -> (i32, i32) {
    %c0_i32 = arith.constant 0 : i32
    %c0_i32_0 = arith.constant 0 : i32
    %c0_i32_1 = arith.constant 0 : i32
    return %c0_i32, %c0_i32_0 : i32, i32
  }
  func.func @transform_6(%arg0: i32) -> (i32, i32) {
    %c0_i32 = arith.constant 0 : i32
    %c0_i32_0 = arith.constant 0 : i32
    %c0_i32_1 = arith.constant 0 : i32
    return %c0_i32, %c0_i32_0 : i32, i32
  }
  func.func @transform_7(%arg0: i32) -> (i32, i32) {
    %c0_i32 = arith.constant 0 : i32
    %c0_i32_0 = arith.constant 0 : i32
    %c0_i32_1 = arith.constant 0 : i32
    return %c0_i32, %c0_i32_0 : i32, i32
  }
  func.func @transform_8(%arg0: i32) -> (i32, i32) {
    %c0_i32 = arith.constant 0 : i32
    %c0_i32_0 = arith.constant 0 : i32
    return %arg0, %c0_i32 : i32, i32
  }
}

</mosaic_0001>

<llo_original>
// kernel: tpu_custom_call.1
$region0: #{tpu_custom_call.1}
  #allocation0 [shape = 'u32[]', space=smem, size = 0x4, offset = 0x4, fixed_abs, tag = 'smem constant byte address 0x4 - core index']
  #allocation1 [shape = 'u32[144,128]{1,0:T(1,128)}', space=vmem, size = 0x12000, scoped, tag = 'internal scratch']
  %s0 = inlined_call_operand.hbm [shape: f32[128,16], index: 0, kind: input, shape index: {}]
  %s1 = inlined_call_operand.hbm [shape: f32[64,4], index: 1, kind: input, shape index: {}]
  %s2 = inlined_call_operand.hbm [shape: bf16[16,32], index: 2, kind: input, shape index: {}]
  %s3 = inlined_call_operand.hbm [shape: f32[1,32], index: 3, kind: input, shape index: {}]
  %s4 = inlined_call_operand.hbm [shape: f32[9,32], index: 4, kind: input, shape index: {}]
  %s5 = inlined_call_operand.hbm [shape: f32[1,32], index: 5, kind: input, shape index: {}]
  %s6 = inlined_call_operand.hbm [shape: bf16[32,16], index: 6, kind: input, shape index: {}]
  %s7 = inlined_call_operand.hbm [shape: f32[1,16], index: 7, kind: input, shape index: {}]
  %s8 = inlined_call_operand.hbm [shape: f32[128,16], index: 8, kind: output, shape index: {}]
  %s9 = sld [smem:[#allocation0]]
  $region97: #{tpu_custom_call.1} parent=0
    _
  %s11 = ssub.s32 1, %s9
  %s12 = scalar_select 0, %s11, %s9
  $region1: #{tpu_custom_call.1} parent=0
    #allocation2 [shape = 'u8[65536]{0}', space=vmem, size = 0x10000, scoped, tag = 'input window, operand 0']
    #allocation3 [shape = 's32[2]{0}', space=sflag, size = 0x8, scoped, tag = 'scoped memory for tpu_custom_call.1']
    #allocation4 [shape = 's32[2]{0}', space=sflag, size = 0x8, scoped, tag = 'scoped memory for tpu_custom_call.1']
    #allocation5 [shape = 'u8[32768]{0}', space=vmem, size = 0x8000, scoped, tag = 'input window, operand 1, single buffered']
    #allocation6 [shape = 's32[1]{0}', space=sflag, size = 0x4, scoped, tag = 'scoped memory for tpu_custom_call.1']
    #allocation7 [shape = 'u8[4096]{0}', space=vmem, size = 0x1000, scoped, tag = 'input window, operand 2, single buffered']
    #allocation8 [shape = 'u8[512]{0}', space=vmem, size = 0x400, scoped, tag = 'input window, operand 3, single buffered']
    #allocation9 [shape = 's32[1]{0}', space=sflag, size = 0x4, scoped, tag = 'scoped memory for tpu_custom_call.1']
    #allocation10 [shape = 'u8[8192]{0}', space=vmem, size = 0x2000, scoped, tag = 'input window, operand 4, single buffered']
    #allocation11 [shape = 'u8[512]{0}', space=vmem, size = 0x400, scoped, tag = 'input window, operand 5, single buffered']
    #allocation12 [shape = 's32[1]{0}', space=sflag, size = 0x4, scoped, tag = 'scoped memory for tpu_custom_call.1']
    #allocation13 [shape = 'u8[8192]{0}', space=vmem, size = 0x2000, scoped, tag = 'input window, operand 6, single buffered']
    #allocation14 [shape = 'u8[512]{0}', space=vmem, size = 0x400, scoped, tag = 'input window, operand 7, single buffered']
    #allocation15 [shape = 's32[1]{0}', space=sflag, size = 0x4, scoped, tag = 'scoped memory for tpu_custom_call.1']
    #allocation16 [shape = 'u8[65536]{0}', space=vmem, size = 0x10000, scoped, tag = 'output window, operand 0']
    %13 = vsyncpa [#allocation3], 0
    %s14 = scalar_lea.sflag [#allocation3], 1
    %15 = vsyncpa %s14, 0
    %16 = vsyncpa [#allocation6], 0
    %17 = vsyncpa [#allocation9], 0
    %18 = vsyncpa [#allocation12], 0
    %19 = vsyncpa [#allocation15], 0
    %20 = vsyncpa [#allocation4], 0
    %s21 = scalar_lea.sflag [#allocation4], 1
    %22 = vsyncpa %s21, 0
    loop: start=0, step=1, limit=4
    $region2: #{tpu_custom_call.1} parent=1 // loop_pre_header
      _
    $region3: #{tpu_custom_call.1} parent=1 // loop_header
      %s24 = sphi 0, %s28
      %p25 = scmp.ge.s32.totalorder %s24, 4
      %s34 = sphi 0, %s36
      %s37 = sphi 0, %s34
      %s38 = sphi 0, %s37
      %s54 = sphi 0, %s38
      %s58 = sphi 0, %s58
      %s60 = sphi 0, %s58
      %s61 = sphi 0, %s60
      %s75 = sphi 0, %s61
      %s79 = sphi 0, %s79
      %s81 = sphi 0, %s79
      %s82 = sphi 0, %s81
      %s96 = sphi 0, %s82
      %s100 = sphi 0, %s100
      %s102 = sphi 0, %s100
      %s103 = sphi 0, %s102
      %s117 = sphi 0, %s103
      %s121 = sphi 0, %s121
      %s123 = sphi 0, %s121
      %s124 = sphi 0, %s123
      %s138 = sphi 0, %s124
      %s142 = sphi 0, %s142
      %s144 = sphi 0, %s142
      %s145 = sphi 0, %s144
      %s159 = sphi 0, %s145
      %s163 = sphi 0, %s163
      %s165 = sphi 0, %s163
      %s166 = sphi 0, %s165
      %s180 = sphi 0, %s166
      %s184 = sphi 0, %s184
      %s186 = sphi 0, %s184
      %s187 = sphi 0, %s186
      %s201 = sphi 0, %s187
      %s207 = sphi 0, %s209
      %s210 = sphi 0, %s207
      %s211 = sphi 0, %s210
      %s227 = sphi 0, %s211
    $region4: #{tpu_custom_call.1} parent=1 // loop_header_branch
      %27 = sbr.rel (%p25) target = $region8
    $region5: #{tpu_custom_call.1} parent=1 // loop_body
      %s29 = ssub.s32 %s24, 1
      %s30 = ssub.s32 %s24, 2
      %s31 = sadd.s32 %s24, 1
      %s32 = ssub.s32 %s24, %s31
      %p33 = scmp.eq.s32.totalorder %s32, 0
      %s35 = sadd.s32 %s34, 1
      %s36 = scalar_select %p33, %s34, %s35
      %p39 = pneg %p33
      %p40 = scmp.eq.s32.totalorder %s24, 1
      %p41 = por %p39, %p40
      %p42 = scmp.ne.s32.totalorder %s34, %s37
      %p43 = scmp.eq.s32.totalorder %s24, 0
      %p44 = por %p42, %p43
      %p45 = scmp.ne.s32.totalorder %s34, %s37
      %p46 = scmp.eq.s32.totalorder %s29, 1
      %p47 = por %p45, %p46
      %p48 = scmp.ne.s32.totalorder %s37, %s38
      %p49 = scmp.eq.s32.totalorder %s29, 0
      %p50 = por %p48, %p49
      %p51 = scmp.ne.s32.totalorder %s37, %s38
      %p52 = scmp.eq.s32.totalorder %s30, 1
      %p53 = por %p51, %p52
      %p55 = scmp.ne.s32.totalorder %s38, %s54
      %p56 = scmp.eq.s32.totalorder %s30, 0
      %p57 = por %p55, %p56
      %s59 = sadd.s32 %s58, 1
      %p62 = scmp.eq.s32.totalorder %s24, 1
      %p63 = scmp.ne.s32.totalorder %s58, %s60
      %p64 = scmp.eq.s32.totalorder %s24, 0
      %p65 = por %p63, %p64
      %p66 = scmp.ne.s32.totalorder %s58, %s60
      %p67 = scmp.eq.s32.totalorder %s29, 1
      %p68 = por %p66, %p67
      %p69 = scmp.ne.s32.totalorder %s60, %s61
      %p70 = scmp.eq.s32.totalorder %s29, 0
      %p71 = por %p69, %p70
      %p72 = scmp.ne.s32.totalorder %s60, %s61
      %p73 = scmp.eq.s32.totalorder %s30, 1
      %p74 = por %p72, %p73
      %p76 = scmp.ne.s32.totalorder %s61, %s75
      %p77 = scmp.eq.s32.totalorder %s30, 0
      %p78 = por %p76, %p77
      %s80 = sadd.s32 %s79, 1
      %p83 = scmp.eq.s32.totalorder %s24, 1
      %p84 = scmp.ne.s32.totalorder %s79, %s81
      %p85 = scmp.eq.s32.totalorder %s24, 0
      %p86 = por %p84, %p85
      %p87 = scmp.ne.s32.totalorder %s79, %s81
      %p88 = scmp.eq.s32.totalorder %s29, 1
      %p89 = por %p87, %p88
      %p90 = scmp.ne.s32.totalorder %s81, %s82
      %p91 = scmp.eq.s32.totalorder %s29, 0
      %p92 = por %p90, %p91
      %p93 = scmp.ne.s32.totalorder %s81, %s82
      %p94 = scmp.eq.s32.totalorder %s30, 1
      %p95 = por %p93, %p94
      %p97 = scmp.ne.s32.totalorder %s82, %s96
      %p98 = scmp.eq.s32.totalorder %s30, 0
      %p99 = por %p97, %p98
      %s101 = sadd.s32 %s100, 1
      %p104 = scmp.eq.s32.totalorder %s24, 1
      %p105 = scmp.ne.s32.totalorder %s100, %s102
      %p106 = scmp.eq.s32.totalorder %s24, 0
      %p107 = por %p105, %p106
      %p108 = scmp.ne.s32.totalorder %s100, %s102
      %p109 = scmp.eq.s32.totalorder %s29, 1
      %p110 = por %p108, %p109
      %p111 = scmp.ne.s32.totalorder %s102, %s103
      %p112 = scmp.eq.s32.totalorder %s29, 0
      %p113 = por %p111, %p112
      %p114 = scmp.ne.s32.totalorder %s102, %s103
      %p115 = scmp.eq.s32.totalorder %s30, 1
      %p116 = por %p114, %p115
      %p118 = scmp.ne.s32.totalorder %s103, %s117
      %p119 = scmp.eq.s32.totalorder %s30, 0
      %p120 = por %p118, %p119
      %s122 = sadd.s32 %s121, 1
      %p125 = scmp.eq.s32.totalorder %s24, 1
      %p126 = scmp.ne.s32.totalorder %s121, %s123
      %p127 = scmp.eq.s32.totalorder %s24, 0
      %p128 = por %p126, %p127
      %p129 = scmp.ne.s32.totalorder %s121, %s123
      %p130 = scmp.eq.s32.totalorder %s29, 1
      %p131 = por %p129, %p130
      %p132 = scmp.ne.s32.totalorder %s123, %s124
      %p133 = scmp.eq.s32.totalorder %s29, 0
      %p134 = por %p132, %p133
      %p135 = scmp.ne.s32.totalorder %s123, %s124
      %p136 = scmp.eq.s32.totalorder %s30, 1
      %p137 = por %p135, %p136
      %p139 = scmp.ne.s32.totalorder %s124, %s138
      %p140 = scmp.eq.s32.totalorder %s30, 0
      %p141 = por %p139, %p140
      %s143 = sadd.s32 %s142, 1
      %p146 = scmp.eq.s32.totalorder %s24, 1
      %p147 = scmp.ne.s32.totalorder %s142, %s144
      %p148 = scmp.eq.s32.totalorder %s24, 0
      %p149 = por %p147, %p148
      %p150 = scmp.ne.s32.totalorder %s142, %s144
      %p151 = scmp.eq.s32.totalorder %s29, 1
      %p152 = por %p150, %p151
      %p153 = scmp.ne.s32.totalorder %s144, %s145
      %p154 = scmp.eq.s32.totalorder %s29, 0
      %p155 = por %p153, %p154
      %p156 = scmp.ne.s32.totalorder %s144, %s145
      %p157 = scmp.eq.s32.totalorder %s30, 1
      %p158 = por %p156, %p157
      %p160 = scmp.ne.s32.totalorder %s145, %s159
      %p161 = scmp.eq.s32.totalorder %s30, 0
      %p162 = por %p160, %p161
      %s164 = sadd.s32 %s163, 1
      %p167 = scmp.eq.s32.totalorder %s24, 1
      %p168 = scmp.ne.s32.totalorder %s163, %s165
      %p169 = scmp.eq.s32.totalorder %s24, 0
      %p170 = por %p168, %p169
      %p171 = scmp.ne.s32.totalorder %s163, %s165
      %p172 = scmp.eq.s32.totalorder %s29, 1
      %p173 = por %p171, %p172
      %p174 = scmp.ne.s32.totalorder %s165, %s166
      %p175 = scmp.eq.s32.totalorder %s29, 0
      %p176 = por %p174, %p175
      %p177 = scmp.ne.s32.totalorder %s165, %s166
      %p178 = scmp.eq.s32.totalorder %s30, 1
      %p179 = por %p177, %p178
      %p181 = scmp.ne.s32.totalorder %s166, %s180
      %p182 = scmp.eq.s32.totalorder %s30, 0
      %p183 = por %p181, %p182
      %s185 = sadd.s32 %s184, 1
      %p188 = scmp.eq.s32.totalorder %s24, 1
      %p189 = scmp.ne.s32.totalorder %s184, %s186
      %p190 = scmp.eq.s32.totalorder %s24, 0
      %p191 = por %p189, %p190
      %p192 = scmp.ne.s32.totalorder %s184, %s186
      %p193 = scmp.eq.s32.totalorder %s29, 1
      %p194 = por %p192, %p193
      %p195 = scmp.ne.s32.totalorder %s186, %s187
      %p196 = scmp.eq.s32.totalorder %s29, 0
      %p197 = por %p195, %p196
      %p198 = scmp.ne.s32.totalorder %s186, %s187
      %p199 = scmp.eq.s32.totalorder %s30, 1
      %p200 = por %p198, %p199
      %p202 = scmp.ne.s32.totalorder %s187, %s201
      %p203 = scmp.eq.s32.totalorder %s30, 0
      %p204 = por %p202, %p203
      %s205 = ssub.s32 %s24, %s31
      %p206 = scmp.eq.s32.totalorder %s205, 0
      %s208 = sadd.s32 %s207, 1
      %s209 = scalar_select %p206, %s207, %s208
      %p212 = pneg %p206
      %p213 = scmp.eq.s32.totalorder %s24, 1
      %p214 = por %p212, %p213
      %p215 = scmp.ne.s32.totalorder %s207, %s210
      %p216 = scmp.eq.s32.totalorder %s24, 0
      %p217 = por %p215, %p216
      %p218 = scmp.ne.s32.totalorder %s207, %s210
      %p219 = scmp.eq.s32.totalorder %s29, 1
      %p220 = por %p218, %p219
      %p221 = scmp.ne.s32.totalorder %s210, %s211
      %p222 = scmp.eq.s32.totalorder %s29, 0
      %p223 = por %p221, %p222
      %p224 = scmp.ne.s32.totalorder %s210, %s211
      %p225 = scmp.eq.s32.totalorder %s30, 1
      %p226 = por %p224, %p225
      %p228 = scmp.ne.s32.totalorder %s211, %s227
      %p229 = scmp.eq.s32.totalorder %s30, 0
      %p230 = por %p228, %p229
      %p231 = scmp.le.s32.totalorder 1, %s24
      %p232 = scmp.lt.s32.totalorder %s24, 3
      %p233 = pnand %p231, %p232
      %p234 = pneg %p233
      // Predicated region
      $region9: #{tpu_custom_call.1} parent=5 // pred_check
        _
      $region10: #{tpu_custom_call.1} parent=5 // pred_check_branch
        %236 = sbr.rel (%p233) target = $region12
      $region11: #{tpu_custom_call.1} parent=5 // pred_region
        %s237 = ssub.s32 %s24, 1
        // Predicated region
        $region13: #{tpu_custom_call.1} parent=11 // pred_check
          %p238 = pneg %p71
        $region14: #{tpu_custom_call.1} parent=11 // pred_check_branch
          %240 = sbr.rel (%p238) target = $region16
        $region15: #{tpu_custom_call.1} parent=11 // pred_region
          %s242 = ssub.s32 1024, 1024
          %243 = vsyncadd [#allocation6], %s242
          %s244 = sshll.u32 [#allocation5], 4
          %s245 = int_to_ptr.vmem [resolvable:$true] %s244
          %250 = dma.hbm_to_vmem [thread:$0]  %s1, 1024, %s245, [#allocation6], 128, 128, 8
        $region16: #{tpu_custom_call.1} parent=11 // pred_fallthru
          _
        // Predicated region
        $region17: #{tpu_custom_call.1} parent=11 // pred_check
          %p251 = pneg %p92
        $region18: #{tpu_custom_call.1} parent=11 // pred_check_branch
          %253 = sbr.rel (%p251) target = $region20
        $region19: #{tpu_custom_call.1} parent=11 // pred_region
          %s255 = ssub.s32 128, 128
          %256 = vsyncadd [#allocation6], %s255
          %s257 = sshll.u32 [#allocation7], 4
          %s258 = int_to_ptr.vmem [resolvable:$true] %s257
          %263 = dma.hbm_to_vmem [thread:$0]  %s2, 128, %s258, [#allocation6], 64, 64, 4
        $region20: #{tpu_custom_call.1} parent=11 // pred_fallthru
          _
        // Predicated region
        $region21: #{tpu_custom_call.1} parent=11 // pred_check
          %p264 = pneg %p113
        $region22: #{tpu_custom_call.1} parent=11 // pred_check_branch
          %266 = sbr.rel (%p264) target = $region24
        $region23: #{tpu_custom_call.1} parent=11 // pred_region
          %s268 = ssub.s32 16, 16
          %269 = vsyncadd [#allocation9], %s268
          %s271 = sshll.u32 [#allocation8], 4
          %s272 = int_to_ptr.vmem [resolvable:$true] %s271
          %274 = dma.hbm_to_vmem [thread:$0]  %s3, 16, %s272, [#allocation9]
        $region24: #{tpu_custom_call.1} parent=11 // pred_fallthru
          _
        // Predicated region
        $region25: #{tpu_custom_call.1} parent=11 // pred_check
          %p275 = pneg %p134
        $region26: #{tpu_custom_call.1} parent=11 // pred_check_branch
          %277 = sbr.rel (%p275) target = $region28
        $region27: #{tpu_custom_call.1} parent=11 // pred_region
          %s279 = ssub.s32 256, 256
          %280 = vsyncadd [#allocation9], %s279
          %s281 = sshll.u32 [#allocation10], 4
          %s282 = int_to_ptr.vmem [resolvable:$true] %s281
          %287 = dma.hbm_to_vmem [thread:$0]  %s4, 256, %s282, [#allocation9], 128, 128, 8
        $region28: #{tpu_custom_call.1} parent=11 // pred_fallthru
          _
        // Predicated region
        $region29: #{tpu_custom_call.1} parent=11 // pred_check
          %p288 = pneg %p155
        $region30: #{tpu_custom_call.1} parent=11 // pred_check_branch
          %290 = sbr.rel (%p288) target = $region32
        $region31: #{tpu_custom_call.1} parent=11 // pred_region
          %s292 = ssub.s32 16, 16
          %293 = vsyncadd [#allocation12], %s292
          %s295 = sshll.u32 [#allocation11], 4
          %s296 = int_to_ptr.vmem [resolvable:$true] %s295
          %298 = dma.hbm_to_vmem [thread:$0]  %s5, 16, %s296, [#allocation12]
        $region32: #{tpu_custom_call.1} parent=11 // pred_fallthru
          _
        // Predicated region
        $region33: #{tpu_custom_call.1} parent=11 // pred_check
          %p299 = pneg %p176
        $region34: #{tpu_custom_call.1} parent=11 // pred_check_branch
          %301 = sbr.rel (%p299) target = $region36
        $region35: #{tpu_custom_call.1} parent=11 // pred_region
          %s303 = ssub.s32 256, 256
          %304 = vsyncadd [#allocation12], %s303
          %s305 = sshll.u32 [#allocation13], 4
          %s306 = int_to_ptr.vmem [resolvable:$true] %s305
          %311 = dma.hbm_to_vmem [thread:$0]  %s6, 256, %s306, [#allocation12], 64, 64, 4
        $region36: #{tpu_custom_call.1} parent=11 // pred_fallthru
          _
        // Predicated region
        $region37: #{tpu_custom_call.1} parent=11 // pred_check
          %p312 = pneg %p197
        $region38: #{tpu_custom_call.1} parent=11 // pred_check_branch
          %314 = sbr.rel (%p312) target = $region40
        $region39: #{tpu_custom_call.1} parent=11 // pred_region
          %s316 = ssub.s32 16, 16
          %317 = vsyncadd [#allocation15], %s316
          %s319 = sshll.u32 [#allocation14], 4
          %s320 = int_to_ptr.vmem [resolvable:$true] %s319
          %322 = dma.hbm_to_vmem [thread:$0]  %s7, 16, %s320, [#allocation15]
        $region40: #{tpu_custom_call.1} parent=11 // pred_fallthru
          _
      $region12: #{tpu_custom_call.1} parent=5 // pred_fallthru
        _
      %p323 = scmp.lt.s32.totalorder %s24, 2
      // Predicated region
      $region41: #{tpu_custom_call.1} parent=5 // pred_check
        %p324 = pneg %p323
      $region42: #{tpu_custom_call.1} parent=5 // pred_check_branch
        %326 = sbr.rel (%p324) target = $region44
      $region43: #{tpu_custom_call.1} parent=5 // pred_region
        // Predicated region
        $region45: #{tpu_custom_call.1} parent=43 // pred_check
          %p327 = pneg %p44
        $region46: #{tpu_custom_call.1} parent=43 // pred_check_branch
          %329 = sbr.rel (%p327) target = $region48
        $region47: #{tpu_custom_call.1} parent=43 // pred_region
          %s330 = sand.u32 %s34, 1
          %s331 = scalar_lea.sflag [#allocation3], %s330
          %s332 = sand.u32 %s34, 1
          %s333 = smul.addr %s332, 64
          %s334 = scalar_lea.vmem [#allocation2], %s333
          %s335 = smul.u32 8, %s24
          %s337 = ssub.s32 1024, 1024
          %338 = vsyncadd %s331, %s337
          %s339 = smul.addr %s335, 128
          %s340 = scalar_lea.hbm %s0, %s339
          %s341 = sshll.u32 %s334, 4
          %s342 = int_to_ptr.vmem [resolvable:$true] %s341
          %347 = dma.hbm_to_vmem [thread:$0]  %s340, 1024, %s342, %s331, 128, 128, 8
        $region48: #{tpu_custom_call.1} parent=43 // pred_fallthru
          _
      $region44: #{tpu_custom_call.1} parent=5 // pred_fallthru
        _
      %p348 = scmp.le.s32.totalorder 1, %s24
      %p349 = scmp.lt.s32.totalorder %s24, 3
      %p350 = pnand %p348, %p349
      %p351 = pneg %p350
      // Predicated region
      $region49: #{tpu_custom_call.1} parent=5 // pred_check
        _
      $region50: #{tpu_custom_call.1} parent=5 // pred_check_branch
        %353 = sbr.rel (%p350) target = $region52
      $region51: #{tpu_custom_call.1} parent=5 // pred_region
        %s354 = ssub.s32 %s24, 1
        %s355 = sand.u32 %s37, 1
        %s356 = scalar_lea.sflag [#allocation3], %s355
        %s357 = sand.u32 %s37, 1
        %s358 = smul.addr %s357, 64
        %s359 = scalar_lea.vmem [#allocation2], %s358
        // Predicated region
        $region53: #{tpu_custom_call.1} parent=51 // pred_check
          %p360 = pneg %p50
        $region54: #{tpu_custom_call.1} parent=51 // pred_check_branch
          %362 = sbr.rel (%p360) target = $region56
        $region55: #{tpu_custom_call.1} parent=51 // pred_region
          %363 = dma.done %s356, 1024
        $region56: #{tpu_custom_call.1} parent=51 // pred_fallthru
          _
        // Predicated region
        $region57: #{tpu_custom_call.1} parent=51 // pred_check
          %p364 = pneg %p71
        $region58: #{tpu_custom_call.1} parent=51 // pred_check_branch
          %366 = sbr.rel (%p364) target = $region60
        $region59: #{tpu_custom_call.1} parent=51 // pred_region
          %367 = dma.done [#allocation6], 1024
        $region60: #{tpu_custom_call.1} parent=51 // pred_fallthru
          _
        // Predicated region
        $region61: #{tpu_custom_call.1} parent=51 // pred_check
          %p368 = pneg %p92
        $region62: #{tpu_custom_call.1} parent=51 // pred_check_branch
          %370 = sbr.rel (%p368) target = $region64
        $region63: #{tpu_custom_call.1} parent=51 // pred_region
          %371 = dma.done [#allocation6], 128
        $region64: #{tpu_custom_call.1} parent=51 // pred_fallthru
          _
        // Predicated region
        $region65: #{tpu_custom_call.1} parent=51 // pred_check
          %p372 = pneg %p113
        $region66: #{tpu_custom_call.1} parent=51 // pred_check_branch
          %374 = sbr.rel (%p372) target = $region68
        $region67: #{tpu_custom_call.1} parent=51 // pred_region
          %375 = dma.done [#allocation9], 16
        $region68: #{tpu_custom_call.1} parent=51 // pred_fallthru
          _
        // Predicated region
        $region69: #{tpu_custom_call.1} parent=51 // pred_check
          %p376 = pneg %p134
        $region70: #{tpu_custom_call.1} parent=51 // pred_check_branch
          %378 = sbr.rel (%p376) target = $region72
        $region71: #{tpu_custom_call.1} parent=51 // pred_region
          %379 = dma.done [#allocation9], 256
        $region72: #{tpu_custom_call.1} parent=51 // pred_fallthru
          _
        // Predicated region
        $region73: #{tpu_custom_call.1} parent=51 // pred_check
          %p380 = pneg %p155
        $region74: #{tpu_custom_call.1} parent=51 // pred_check_branch
          %382 = sbr.rel (%p380) target = $region76
        $region75: #{tpu_custom_call.1} parent=51 // pred_region
          %383 = dma.done [#allocation12], 16
        $region76: #{tpu_custom_call.1} parent=51 // pred_fallthru
          _
        // Predicated region
        $region77: #{tpu_custom_call.1} parent=51 // pred_check
          %p384 = pneg %p176
        $region78: #{tpu_custom_call.1} parent=51 // pred_check_branch
          %386 = sbr.rel (%p384) target = $region80
        $region79: #{tpu_custom_call.1} parent=51 // pred_region
          %387 = dma.done [#allocation12], 256
        $region80: #{tpu_custom_call.1} parent=51 // pred_fallthru
          _
        // Predicated region
        $region81: #{tpu_custom_call.1} parent=51 // pred_check
          %p388 = pneg %p197
        $region82: #{tpu_custom_call.1} parent=51 // pred_check_branch
          %390 = sbr.rel (%p388) target = $region84
        $region83: #{tpu_custom_call.1} parent=51 // pred_region
          %391 = dma.done [#allocation15], 16
        $region84: #{tpu_custom_call.1} parent=51 // pred_fallthru
          _
        %s392 = sand.u32 %s37, 1
        %s393 = scalar_lea.sflag [#allocation3], %s392
        %s394 = sand.u32 %s37, 1
        %s395 = smul.addr %s394, 64
        %s396 = scalar_lea.vmem [#allocation2], %s395
        %p397 = pneg %p50
        %p398 = pneg %p47
        %p399 = pneg %p71
        %p400 = pneg %p68
        %p401 = pneg %p92
        %p402 = pneg %p89
        %p403 = pneg %p113
        %p404 = pneg %p110
        %p405 = pneg %p134
        %p406 = pneg %p131
        %p407 = pneg %p155
        %p408 = pneg %p152
        %p409 = pneg %p176
        %p410 = pneg %p173
        %p411 = pneg %p197
        %p412 = pneg %p194
        %p413 = pneg %p223
        %p414 = pneg %p220
        %s415 = sand.u32 %s210, 1
        %s416 = scalar_lea.sflag [#allocation4], %s415
        %s417 = sand.u32 %s210, 1
        %s418 = smul.addr %s417, 64
        %s419 = scalar_lea.vmem [#allocation16], %s418
        %s420 = smul.u32 8, %s29
        %s421 = smul.u32 8, %s29
        %v423 = vld [vmem:[%s359] sm:$0xff]
        %v424 = vld [vmem:[%s359 + $0x8] sm:$0xff]
        %v425 = vld [vmem:[%s359 + $0x10] sm:$0xff]
        %v426 = vld [vmem:[%s359 + $0x18] sm:$0xff]
        %v427 = vld [vmem:[%s359 + $0x20] sm:$0xff]
        %v428 = vld [vmem:[%s359 + $0x28] sm:$0xff]
        %v429 = vld [vmem:[%s359 + $0x30] sm:$0xff]
        %v430 = vld [vmem:[%s359 + $0x38] sm:$0xff]
        %v431 = vpack.c.bf16 %v424, %v423
        %v432 = vpack.c.bf16 %v426, %v425
        %v433 = vpack.c.bf16 %v428, %v427
        %v434 = vpack.c.bf16 %v430, %v429
        %v435 = vld [vmem:[#allocation7] sm:$0xf]
        %v436 = vld [vmem:[#allocation7 + $0x4] sm:$0xf]
        %v437 = vld [vmem:[#allocation8] sm:$0x1]
        %v439 = vlaneseq
        %v440 = vshrl.u32 %v439, 7
        %v441 = vsub.s32 0, %v440
        %v442 = vrot.slane %v437, %v441
        %v446 = vunpack.c.l.b16 %v435
        %v447 = vunpack.c.l.b16 %v436
        %v448 = vpack.c.b16 %v447, %v446
        %vm450 = vcmask 130048
        %v452 = vsel %vm450, %v431, 0
        %v455 = vsel %vm450, %v432, 0
        %v458 = vsel %vm450, %v433, 0
        %v461 = vsel %vm450, %v434, 0
        %463 = vmatprep.subr.bf16.mxu0 0
        %464 = vmatpush1.bf16.msra.mxu0 %v448
        %465 = vmatprep.subr.bf16.mxu0 0
        %466 = vmatpush1.bf16.msra.mxu0 0
        %467 = vmatprep.subr.bf16.mxu0 0
        %468 = vmatpush1.bf16.msra.mxu0 0
        %469 = vmatprep.subr.bf16.mxu0 0
        %470 = vmatpush1.bf16.msra.mxu0 0
        %471 = vmatprep.subr.bf16.mxu0 0
        %472 = vmatpush1.bf16.msra.mxu0 0
        %473 = vmatprep.subr.bf16.mxu0 0
        %474 = vmatpush1.bf16.msra.mxu0 0
        %475 = vmatprep.subr.bf16.mxu0 0
        %476 = vmatpush1.bf16.msra.mxu0 0
        %477 = vmatprep.subr.bf16.mxu0 0
        %478 = vmatpush1.bf16.msra.mxu0 0
        %479 = vmatprep.subr.bf16.mxu0 0
        %480 = vmatpush1.bf16.msra.mxu0 0
        %481 = vmatprep.subr.bf16.mxu0 0
        %482 = vmatpush1.bf16.msra.mxu0 0
        %483 = vmatprep.subr.bf16.mxu0 0
        %484 = vmatpush1.bf16.msra.mxu0 0
        %485 = vmatprep.subr.bf16.mxu0 0
        %486 = vmatpush1.bf16.msra.mxu0 0
        %487 = vmatprep.subr.bf16.mxu0 0
        %488 = vmatpush1.bf16.msra.mxu0 0
        %489 = vmatprep.subr.bf16.mxu0 0
        %490 = vmatpush1.bf16.msra.mxu0 0
        %491 = vmatprep.subr.bf16.mxu0 0
        %492 = vmatpush1.bf16.msra.mxu0 0
        %493 = vmatprep.subr.bf16.mxu0 0
        %494 = vmatpush1.bf16.msra.mxu0 0
        %495 = vmatprep.mubr.bf16.mxu0 0
        %496 = vmatmul.mubr.bf16.gmra.mrb[0].mxu0 %v452
        %v497 = vpop.f32.mrb[0].mxu0
        %v498 = vadd.f32 %v442, %v497
        %v499 = vpop.f32.mrb[0].mxu0
        %v500 = vpop.f32.mrb[0].mxu0
        %v501 = vadd.f32 %v442, %v500
        %v502 = vpop.f32.mrb[0].mxu0
        %503 = vmatprep.mubr.bf16.mxu0 0
        %504 = vmatmul.mubr.bf16.gmra.mrb[0].mxu0 %v455
        %v505 = vpop.f32.mrb[0].mxu0
        %v506 = vadd.f32 %v442, %v505
        %v507 = vpop.f32.mrb[0].mxu0
        %v508 = vpop.f32.mrb[0].mxu0
        %v509 = vadd.f32 %v442, %v508
        %v510 = vpop.f32.mrb[0].mxu0
        %511 = vmatprep.mubr.bf16.mxu0 0
        %512 = vmatmul.mubr.bf16.gmra.mrb[0].mxu0 %v458
        %v513 = vpop.f32.mrb[0].mxu0
        %v514 = vadd.f32 %v442, %v513
        %v515 = vpop.f32.mrb[0].mxu0
        %v516 = vpop.f32.mrb[0].mxu0
        %v517 = vadd.f32 %v442, %v516
        %v518 = vpop.f32.mrb[0].mxu0
        %519 = vmatprep.mubr.bf16.mxu0 0
        %520 = vmatmul.mubr.bf16.gmra.mrb[0].mxu0 %v461
        %v521 = vpop.f32.mrb[0].mxu0
        %v522 = vadd.f32 %v442, %v521
        %v523 = vpop.f32.mrb[0].mxu0
        %v524 = vpop.f32.mrb[0].mxu0
        %v525 = vadd.f32 %v442, %v524
        %v526 = vpop.f32.mrb[0].mxu0
        %527 = vdwg.mxu0
        %v528 = vadd.f32 %v498, 3.0
        %v529 = vadd.f32 %v501, 3.0
        %v530 = vadd.f32 %v506, 3.0
        %v531 = vadd.f32 %v509, 3.0
        %v532 = vadd.f32 %v514, 3.0
        %v533 = vadd.f32 %v517, 3.0
        %v534 = vadd.f32 %v522, 3.0
        %v535 = vadd.f32 %v525, 3.0
        %v536 = vmax.f32 %v528, 0.0
        %v537 = vmax.f32 %v529, 0.0
        %v538 = vmax.f32 %v530, 0.0
        %v539 = vmax.f32 %v531, 0.0
        %v540 = vmax.f32 %v532, 0.0
        %v541 = vmax.f32 %v533, 0.0
        %v542 = vmax.f32 %v534, 0.0
        %v543 = vmax.f32 %v535, 0.0
        %v544 = vmin.f32 %v536, 6.0
        %v545 = vmin.f32 %v537, 6.0
        %v546 = vmin.f32 %v538, 6.0
        %v547 = vmin.f32 %v539, 6.0
        %v548 = vmin.f32 %v540, 6.0
        %v549 = vmin.f32 %v541, 6.0
        %v550 = vmin.f32 %v542, 6.0
        %v551 = vmin.f32 %v543, 6.0
        %v552 = vmul.f32 %v498, %v544
        %v553 = vmul.f32 %v501, %v545
        %v554 = vmul.f32 %v506, %v546
        %v555 = vmul.f32 %v509, %v547
        %v556 = vmul.f32 %v514, %v548
        %v557 = vmul.f32 %v517, %v549
        %v558 = vmul.f32 %v522, %v550
        %v559 = vmul.f32 %v525, %v551
        %v560 = vld [vmem:[#allocation5] sm:$0xff]
        %v561 = vld [vmem:[#allocation5 + $0x8] sm:$0xff]
        %v562 = vld [vmem:[#allocation5 + $0x10] sm:$0xff]
        %v563 = vld [vmem:[#allocation5 + $0x18] sm:$0xff]
        %v564 = vld [vmem:[#allocation5 + $0x20] sm:$0xff]
        %v565 = vld [vmem:[#allocation5 + $0x28] sm:$0xff]
        %v566 = vld [vmem:[#allocation5 + $0x30] sm:$0xff]
        %v567 = vld [vmem:[#allocation5 + $0x38] sm:$0xff]
        %v568 = vld [vmem:[#allocation10] sm:$0xff]
        %v569 = vld [vmem:[#allocation10 + $0x8] sm:$0x1]
        %571 = vset.pattern.permute.xlu0 0
        %572 = vperm.xlu0 %571, %v560
        %v573 = vpop.permute.xlu0 %572
        %576 = vset.pattern.permute.xlu0 0
        %577 = vperm.xlu0 %576, %v561
        %v578 = vpop.permute.xlu0 %577
        %581 = vset.pattern.permute.xlu0 0
        %582 = vperm.xlu0 %581, %v562
        %v583 = vpop.permute.xlu0 %582
        %586 = vset.pattern.permute.xlu0 0
        %587 = vperm.xlu0 %586, %v563
        %v588 = vpop.permute.xlu0 %587
        %591 = vset.pattern.permute.xlu0 0
        %592 = vperm.xlu0 %591, %v564
        %v593 = vpop.permute.xlu0 %592
        %596 = vset.pattern.permute.xlu0 0
        %597 = vperm.xlu0 %596, %v565
        %v598 = vpop.permute.xlu0 %597
        %601 = vset.pattern.permute.xlu0 0
        %602 = vperm.xlu0 %601, %v566
        %v603 = vpop.permute.xlu0 %602
        %606 = vset.pattern.permute.xlu0 0
        %607 = vperm.xlu0 %606, %v567
        %v608 = vpop.permute.xlu0 %607
        %v610 = vmul.f32 %v559, %v573
        %v611 = vmul.f32 %v552, %v578
        %v612 = vmul.f32 %v553, %v583
        %v613 = vmul.f32 %v554, %v588
        %v614 = vmul.f32 %v555, %v593
        %v615 = vmul.f32 %v556, %v598
        %v616 = vmul.f32 %v557, %v603
        %v617 = vmul.f32 %v558, %v608
        %618 = vset.pattern.permute.xlu0 1
        %619 = vperm.xlu0 %618, %v560
        %v620 = vpop.permute.xlu0 %619
        %622 = vset.pattern.permute.xlu0 1
        %623 = vperm.xlu0 %622, %v561
        %v624 = vpop.permute.xlu0 %623
        %626 = vset.pattern.permute.xlu0 1
        %627 = vperm.xlu0 %626, %v562
        %v628 = vpop.permute.xlu0 %627
        %630 = vset.pattern.permute.xlu0 1
        %631 = vperm.xlu0 %630, %v563
        %v632 = vpop.permute.xlu0 %631
        %634 = vset.pattern.permute.xlu0 1
        %635 = vperm.xlu0 %634, %v564
        %v636 = vpop.permute.xlu0 %635
        %638 = vset.pattern.permute.xlu0 1
        %639 = vperm.xlu0 %638, %v565
        %v640 = vpop.permute.xlu0 %639
        %642 = vset.pattern.permute.xlu0 1
        %643 = vperm.xlu0 %642, %v566
        %v644 = vpop.permute.xlu0 %643
        %646 = vset.pattern.permute.xlu0 1
        %647 = vperm.xlu0 %646, %v567
        %v648 = vpop.permute.xlu0 %647
        %v650 = vmul.f32 %v553, %v620
        %v651 = vmul.f32 %v554, %v624
        %v652 = vmul.f32 %v555, %v628
        %v653 = vmul.f32 %v556, %v632
        %v654 = vmul.f32 %v557, %v636
        %v655 = vmul.f32 %v558, %v640
        %v656 = vmul.f32 %v559, %v644
        %v657 = vmul.f32 %v552, %v648
        %v658 = vlaneseq
        %v659 = vshrl.u32 %v658, 7
        %v660 = vsub.s32 0, %v659
        %v661 = vrot.slane %v568, %v660
        %v662 = vmul.f32 %v610, %v661
        %v663 = vmul.f32 %v611, %v661
        %v664 = vmul.f32 %v612, %v661
        %v665 = vmul.f32 %v613, %v661
        %v666 = vmul.f32 %v614, %v661
        %v667 = vmul.f32 %v615, %v661
        %v668 = vmul.f32 %v616, %v661
        %v669 = vmul.f32 %v617, %v661
        %v670 = vlaneseq
        %v671 = vshrl.u32 %v670, 7
        %v672 = vsub.s32 3, %v671
        %v673 = vrot.slane %v568, %v672
        %v674 = vmul.f32 %v552, %v673
        %v675 = vmul.f32 %v553, %v673
        %v676 = vmul.f32 %v554, %v673
        %v677 = vmul.f32 %v555, %v673
        %v678 = vmul.f32 %v556, %v673
        %v679 = vmul.f32 %v557, %v673
        %v680 = vmul.f32 %v558, %v673
        %v681 = vmul.f32 %v559, %v673
        %v682 = vadd.f32 %v662, %v674
        %v683 = vadd.f32 %v663, %v675
        %v684 = vadd.f32 %v664, %v676
        %v685 = vadd.f32 %v665, %v677
        %v686 = vadd.f32 %v666, %v678
        %v687 = vadd.f32 %v667, %v679
        %v688 = vadd.f32 %v668, %v680
        %v689 = vadd.f32 %v669, %v681
        %v690 = vlaneseq
        %v691 = vshrl.u32 %v690, 7
        %v692 = vsub.s32 6, %v691
        %v693 = vrot.slane %v568, %v692
        %v694 = vmul.f32 %v650, %v693
        %v695 = vmul.f32 %v651, %v693
        %v696 = vmul.f32 %v652, %v693
        %v697 = vmul.f32 %v653, %v693
        %v698 = vmul.f32 %v654, %v693
        %v699 = vmul.f32 %v655, %v693
        %v700 = vmul.f32 %v656, %v693
        %v701 = vmul.f32 %v657, %v693
        %v702 = vadd.f32 %v682, %v694
        %v703 = vadd.f32 %v683, %v695
        %v704 = vadd.f32 %v684, %v696
        %v705 = vadd.f32 %v685, %v697
        %v706 = vadd.f32 %v686, %v698
        %v707 = vadd.f32 %v687, %v699
        %v708 = vadd.f32 %v688, %v700
        %v709 = vadd.f32 %v689, %v701
        %v710 = vlaneseq
        %v711 = vshrl.u32 %v710, 7
        %v712 = vsub.s32 2, %v711
        %v713 = vrot.slane %v568, %v712
        %v714 = vmul.f32 %v610, %v713
        %v715 = vmul.f32 %v611, %v713
        %v716 = vmul.f32 %v612, %v713
        %v717 = vmul.f32 %v613, %v713
        %v718 = vmul.f32 %v614, %v713
        %v719 = vmul.f32 %v615, %v713
        %v720 = vmul.f32 %v616, %v713
        %v721 = vmul.f32 %v617, %v713
        %v722 = vlaneseq
        %v723 = vshrl.u32 %v722, 7
        %v724 = vsub.s32 5, %v723
        %v725 = vrot.slane %v568, %v724
        %v726 = vmul.f32 %v552, %v725
        %v727 = vmul.f32 %v553, %v725
        %v728 = vmul.f32 %v554, %v725
        %v729 = vmul.f32 %v555, %v725
        %v730 = vmul.f32 %v556, %v725
        %v731 = vmul.f32 %v557, %v725
        %v732 = vmul.f32 %v558, %v725
        %v733 = vmul.f32 %v559, %v725
        %v734 = vadd.f32 %v714, %v726
        %v735 = vadd.f32 %v715, %v727
        %v736 = vadd.f32 %v716, %v728
        %v737 = vadd.f32 %v717, %v729
        %v738 = vadd.f32 %v718, %v730
        %v739 = vadd.f32 %v719, %v731
        %v740 = vadd.f32 %v720, %v732
        %v741 = vadd.f32 %v721, %v733
        %v742 = vlaneseq
        %v743 = vshrl.u32 %v742, 7
        %v744 = vsub.s32 0, %v743
        %v745 = vrot.slane %v569, %v744
        %v746 = vmul.f32 %v650, %v745
        %v747 = vmul.f32 %v651, %v745
        %v748 = vmul.f32 %v652, %v745
        %v749 = vmul.f32 %v653, %v745
        %v750 = vmul.f32 %v654, %v745
        %v751 = vmul.f32 %v655, %v745
        %v752 = vmul.f32 %v656, %v745
        %v753 = vmul.f32 %v657, %v745
        %v754 = vadd.f32 %v734, %v746
        %v755 = vadd.f32 %v735, %v747
        %v756 = vadd.f32 %v736, %v748
        %v757 = vadd.f32 %v737, %v749
        %v758 = vadd.f32 %v738, %v750
        %v759 = vadd.f32 %v739, %v751
        %v760 = vadd.f32 %v740, %v752
        %v761 = vadd.f32 %v741, %v753
        %v762 = vld [vmem:[#allocation11] sm:$0x1]
        %v763 = vlaneseq
        %v764 = vshrl.u32 %v763, 7
        %v765 = vsub.s32 4, %v764
        %v766 = vrot.slane %v568, %v765
        %v767 = vmul.f32 %v552, %v766
        %v768 = vmul.f32 %v553, %v766
        %v769 = vmul.f32 %v554, %v766
        %v770 = vmul.f32 %v555, %v766
        %v771 = vmul.f32 %v556, %v766
        %v772 = vmul.f32 %v557, %v766
        %v773 = vmul.f32 %v558, %v766
        %v774 = vmul.f32 %v559, %v766
        %v776 = vlaneseq
        %v777 = vshrl.u32 %v776, 7
        %v778 = vsub.s32 0, %v777
        %v779 = vrot.slane %v762, %v778
        %v781 = vadd.f32 %v779, %v767
        %v782 = vadd.f32 %v779, %v768
        %v783 = vadd.f32 %v779, %v769
        %v784 = vadd.f32 %v779, %v770
        %v785 = vadd.f32 %v779, %v771
        %v786 = vadd.f32 %v779, %v772
        %v787 = vadd.f32 %v779, %v773
        %v788 = vadd.f32 %v779, %v774
        %v789 = vlaneseq
        %v790 = vshrl.u32 %v789, 7
        %v791 = vsub.s32 1, %v790
        %v792 = vrot.slane %v568, %v791
        %v793 = vmul.f32 %v610, %v792
        %v794 = vmul.f32 %v611, %v792
        %v795 = vmul.f32 %v612, %v792
        %v796 = vmul.f32 %v613, %v792
        %v797 = vmul.f32 %v614, %v792
        %v798 = vmul.f32 %v615, %v792
        %v799 = vmul.f32 %v616, %v792
        %v800 = vmul.f32 %v617, %v792
        %v801 = vadd.f32 %v781, %v793
        %v802 = vadd.f32 %v782, %v794
        %v803 = vadd.f32 %v783, %v795
        %v804 = vadd.f32 %v784, %v796
        %v805 = vadd.f32 %v785, %v797
        %v806 = vadd.f32 %v786, %v798
        %v807 = vadd.f32 %v787, %v799
        %v808 = vadd.f32 %v788, %v800
        %v809 = vlaneseq
        %v810 = vshrl.u32 %v809, 7
        %v811 = vsub.s32 7, %v810
        %v812 = vrot.slane %v568, %v811
        %v813 = vmul.f32 %v650, %v812
        %v814 = vmul.f32 %v651, %v812
        %v815 = vmul.f32 %v652, %v812
        %v816 = vmul.f32 %v653, %v812
        %v817 = vmul.f32 %v654, %v812
        %v818 = vmul.f32 %v655, %v812
        %v819 = vmul.f32 %v656, %v812
        %v820 = vmul.f32 %v657, %v812
        %v821 = vadd.f32 %v801, %v813
        %v822 = vadd.f32 %v802, %v814
        %v823 = vadd.f32 %v803, %v815
        %v824 = vadd.f32 %v804, %v816
        %v825 = vadd.f32 %v805, %v817
        %v826 = vadd.f32 %v806, %v818
        %v827 = vadd.f32 %v807, %v819
        %v828 = vadd.f32 %v808, %v820
        %v829 = vrot.slane %v702, 7
        %v830 = vrot.slane %v703, 7
        %v831 = vrot.slane %v704, 7
        %v832 = vrot.slane %v705, 7
        %v833 = vrot.slane %v706, 7
        %v834 = vrot.slane %v707, 7
        %v835 = vrot.slane %v708, 7
        %v836 = vrot.slane %v709, 7
        %v837 = vlaneseq
        %v838 = vshrl.u32 %v837, 7
        %vm839 = vcmp.lt.s32.totalorder %v838, 1
        %v840 = vsel %vm839, %v835, %v836
        %v841 = vsel %vm839, %v834, %v835
        %v842 = vsel %vm839, %v833, %v834
        %v843 = vsel %vm839, %v832, %v833
        %v844 = vsel %vm839, %v831, %v832
        %v845 = vsel %vm839, %v830, %v831
        %v846 = vsel %vm839, %v829, %v830
        %v847 = vsel %vm839, %v836, %v829
        %848 = vset.pattern.permute.xlu0 2
        %849 = vperm.xlu0 %848, %v560
        %v850 = vpop.permute.xlu0 %849
        %852 = vset.pattern.permute.xlu0 2
        %853 = vperm.xlu0 %852, %v561
        %v854 = vpop.permute.xlu0 %853
        %856 = vset.pattern.permute.xlu0 2
        %857 = vperm.xlu0 %856, %v562
        %v858 = vpop.permute.xlu0 %857
        %860 = vset.pattern.permute.xlu0 2
        %861 = vperm.xlu0 %860, %v563
        %v862 = vpop.permute.xlu0 %861
        %864 = vset.pattern.permute.xlu0 2
        %865 = vperm.xlu0 %864, %v564
        %v866 = vpop.permute.xlu0 %865
        %868 = vset.pattern.permute.xlu0 2
        %869 = vperm.xlu0 %868, %v565
        %v870 = vpop.permute.xlu0 %869
        %872 = vset.pattern.permute.xlu0 2
        %873 = vperm.xlu0 %872, %v566
        %v874 = vpop.permute.xlu0 %873
        %876 = vset.pattern.permute.xlu0 2
        %877 = vperm.xlu0 %876, %v567
        %v878 = vpop.permute.xlu0 %877
        %v880 = vmul.f32 %v847, %v850
        %v881 = vmul.f32 %v846, %v854
        %v882 = vmul.f32 %v845, %v858
        %v883 = vmul.f32 %v844, %v862
        %v884 = vmul.f32 %v843, %v866
        %v885 = vmul.f32 %v842, %v870
        %v886 = vmul.f32 %v841, %v874
        %v887 = vmul.f32 %v840, %v878
        %v888 = vadd.f32 %v821, %v880
        %v889 = vadd.f32 %v822, %v881
        %v890 = vadd.f32 %v823, %v882
        %v891 = vadd.f32 %v824, %v883
        %v892 = vadd.f32 %v825, %v884
        %v893 = vadd.f32 %v826, %v885
        %v894 = vadd.f32 %v827, %v886
        %v895 = vadd.f32 %v828, %v887
        %v896 = vrot.slane %v754, 1
        %v897 = vrot.slane %v755, 1
        %v898 = vrot.slane %v756, 1
        %v899 = vrot.slane %v757, 1
        %v900 = vrot.slane %v758, 1
        %v901 = vrot.slane %v759, 1
        %v902 = vrot.slane %v760, 1
        %v903 = vrot.slane %v761, 1
        %vm904 = vcmp.lt.s32.totalorder %v838, 7
        %v905 = vsel %vm904, %v902, %v903
        %v906 = vsel %vm904, %v901, %v902
        %v907 = vsel %vm904, %v900, %v901
        %v908 = vsel %vm904, %v899, %v900
        %v909 = vsel %vm904, %v898, %v899
        %v910 = vsel %vm904, %v897, %v898
        %v911 = vsel %vm904, %v896, %v897
        %v912 = vsel %vm904, %v903, %v896
        %913 = vset.pattern.permute.xlu0 3
        %914 = vperm.xlu0 %913, %v560
        %v915 = vpop.permute.xlu0 %914
        %917 = vset.pattern.permute.xlu0 3
        %918 = vperm.xlu0 %917, %v561
        %v919 = vpop.permute.xlu0 %918
        %921 = vset.pattern.permute.xlu0 3
        %922 = vperm.xlu0 %921, %v562
        %v923 = vpop.permute.xlu0 %922
        %925 = vset.pattern.permute.xlu0 3
        %926 = vperm.xlu0 %925, %v563
        %v927 = vpop.permute.xlu0 %926
        %929 = vset.pattern.permute.xlu0 3
        %930 = vperm.xlu0 %929, %v564
        %v931 = vpop.permute.xlu0 %930
        %933 = vset.pattern.permute.xlu0 3
        %934 = vperm.xlu0 %933, %v565
        %v935 = vpop.permute.xlu0 %934
        %937 = vset.pattern.permute.xlu0 3
        %938 = vperm.xlu0 %937, %v566
        %v939 = vpop.permute.xlu0 %938
        %941 = vset.pattern.permute.xlu0 3
        %942 = vperm.xlu0 %941, %v567
        %v943 = vpop.permute.xlu0 %942
        %v945 = vmul.f32 %v911, %v915
        %v946 = vmul.f32 %v910, %v919
        %v947 = vmul.f32 %v909, %v923
        %v948 = vmul.f32 %v908, %v927
        %v949 = vmul.f32 %v907, %v931
        %v950 = vmul.f32 %v906, %v935
        %v951 = vmul.f32 %v905, %v939
        %v952 = vmul.f32 %v912, %v943
        %v953 = vadd.f32 %v888, %v945
        %v954 = vadd.f32 %v889, %v946
        %v955 = vadd.f32 %v890, %v947
        %v956 = vadd.f32 %v891, %v948
        %v957 = vadd.f32 %v892, %v949
        %v958 = vadd.f32 %v893, %v950
        %v959 = vadd.f32 %v894, %v951
        %v960 = vadd.f32 %v895, %v952
        %v961 = vadd.f32 %v953, 3.0
        %v962 = vadd.f32 %v954, 3.0
        %v963 = vadd.f32 %v955, 3.0
        %v964 = vadd.f32 %v956, 3.0
        %v965 = vadd.f32 %v957, 3.0
        %v966 = vadd.f32 %v958, 3.0
        %v967 = vadd.f32 %v959, 3.0
        %v968 = vadd.f32 %v960, 3.0
        %v969 = vmax.f32 %v961, 0.0
        %v970 = vmax.f32 %v962, 0.0
        %v971 = vmax.f32 %v963, 0.0
        %v972 = vmax.f32 %v964, 0.0
        %v973 = vmax.f32 %v965, 0.0
        %v974 = vmax.f32 %v966, 0.0
        %v975 = vmax.f32 %v967, 0.0
        %v976 = vmax.f32 %v968, 0.0
        %v977 = vmin.f32 %v969, 6.0
        %v978 = vmin.f32 %v970, 6.0
        %v979 = vmin.f32 %v971, 6.0
        %v980 = vmin.f32 %v972, 6.0
        %v981 = vmin.f32 %v973, 6.0
        %v982 = vmin.f32 %v974, 6.0
        %v983 = vmin.f32 %v975, 6.0
        %v984 = vmin.f32 %v976, 6.0
        %v985 = vmul.f32 %v953, %v977
        %v986 = vmul.f32 %v954, %v978
        %v987 = vmul.f32 %v955, %v979
        %v988 = vmul.f32 %v956, %v980
        %v989 = vmul.f32 %v957, %v981
        %v990 = vmul.f32 %v958, %v982
        %v991 = vmul.f32 %v959, %v983
        %v992 = vmul.f32 %v960, %v984
        %v993 = vpack.c.bf16 %v986, %v985
        %v994 = vpack.c.bf16 %v988, %v987
        %v995 = vpack.c.bf16 %v990, %v989
        %v996 = vpack.c.bf16 %v992, %v991
        %v997 = vld [vmem:[#allocation13] sm:$0xf]
        %v998 = vld [vmem:[#allocation13 + $0x4] sm:$0xf]
        %v999 = vld [vmem:[#allocation13 + $0x8] sm:$0xf]
        %v1000 = vld [vmem:[#allocation13 + $0xc] sm:$0xf]
        %v1001 = vld [vmem:[#allocation14] sm:$0x1]
        %v1003 = vlaneseq
        %v1004 = vshrl.u32 %v1003, 7
        %v1005 = vsub.s32 0, %v1004
        %v1006 = vrot.slane %v1001, %v1005
        %v1012 = vunpack.c.l.b16 %v997
        %v1013 = vunpack.c.l.b16 %v998
        %v1014 = vunpack.c.l.b16 %v999
        %v1015 = vunpack.c.l.b16 %v1000
        %v1016 = vpack.c.b16 %v1013, %v1012
        %v1017 = vpack.c.b16 %v1015, %v1014
        %vm1020 = vcmask 261120
        %v1022 = vsel %vm1020, %v993, 0
        %v1025 = vsel %vm1020, %v994, 0
        %v1028 = vsel %vm1020, %v995, 0
        %v1031 = vsel %vm1020, %v996, 0
        %1033 = vmatprep.subr.bf16.mxu0 0
        %1034 = vmatpush1.bf16.msra.mxu0 %v1016
        %1035 = vmatprep.subr.bf16.mxu0 0
        %1036 = vmatpush1.bf16.msra.mxu0 %v1017
        %1037 = vmatprep.subr.bf16.mxu0 0
        %1038 = vmatpush1.bf16.msra.mxu0 0
        %1039 = vmatprep.subr.bf16.mxu0 0
        %1040 = vmatpush1.bf16.msra.mxu0 0
        %1041 = vmatprep.subr.bf16.mxu0 0
        %1042 = vmatpush1.bf16.msra.mxu0 0
        %1043 = vmatprep.subr.bf16.mxu0 0
        %1044 = vmatpush1.bf16.msra.mxu0 0
        %1045 = vmatprep.subr.bf16.mxu0 0
        %1046 = vmatpush1.bf16.msra.mxu0 0
        %1047 = vmatprep.subr.bf16.mxu0 0
        %1048 = vmatpush1.bf16.msra.mxu0 0
        %1049 = vmatprep.subr.bf16.mxu0 0
        %1050 = vmatpush1.bf16.msra.mxu0 0
        %1051 = vmatprep.subr.bf16.mxu0 0
        %1052 = vmatpush1.bf16.msra.mxu0 0
        %1053 = vmatprep.subr.bf16.mxu0 0
        %1054 = vmatpush1.bf16.msra.mxu0 0
        %1055 = vmatprep.subr.bf16.mxu0 0
        %1056 = vmatpush1.bf16.msra.mxu0 0
        %1057 = vmatprep.subr.bf16.mxu0 0
        %1058 = vmatpush1.bf16.msra.mxu0 0
        %1059 = vmatprep.subr.bf16.mxu0 0
        %1060 = vmatpush1.bf16.msra.mxu0 0
        %1061 = vmatprep.subr.bf16.mxu0 0
        %1062 = vmatpush1.bf16.msra.mxu0 0
        %1063 = vmatprep.subr.bf16.mxu0 0
        %1064 = vmatpush1.bf16.msra.mxu0 0
        %1065 = vmatprep.mubr.bf16.mxu0 0
        %1066 = vmatmul.mubr.bf16.gmra.mrb[0].mxu0 %v1022
        %v1067 = vpop.f32.mrb[0].mxu0
        %v1068 = vadd.f32 %v1006, %v1067
        %v1069 = vpop.f32.mrb[0].mxu0
        %v1070 = vpop.f32.mrb[0].mxu0
        %v1071 = vadd.f32 %v1006, %v1070
        %v1072 = vpop.f32.mrb[0].mxu0
        %1073 = vmatprep.mubr.bf16.mxu0 0
        %1074 = vmatmul.mubr.bf16.gmra.mrb[0].mxu0 %v1025
        %v1075 = vpop.f32.mrb[0].mxu0
        %v1076 = vadd.f32 %v1006, %v1075
        %v1077 = vpop.f32.mrb[0].mxu0
        %v1078 = vpop.f32.mrb[0].mxu0
        %v1079 = vadd.f32 %v1006, %v1078
        %v1080 = vpop.f32.mrb[0].mxu0
        %1081 = vmatprep.mubr.bf16.mxu0 0
        %1082 = vmatmul.mubr.bf16.gmra.mrb[0].mxu0 %v1028
        %v1083 = vpop.f32.mrb[0].mxu0
        %v1084 = vadd.f32 %v1006, %v1083
        %v1085 = vpop.f32.mrb[0].mxu0
        %v1086 = vpop.f32.mrb[0].mxu0
        %v1087 = vadd.f32 %v1006, %v1086
        %v1088 = vpop.f32.mrb[0].mxu0
        %1089 = vmatprep.mubr.bf16.mxu0 0
        %1090 = vmatmul.mubr.bf16.gmra.mrb[0].mxu0 %v1031
        %v1091 = vpop.f32.mrb[0].mxu0
        %v1092 = vadd.f32 %v1006, %v1091
        %v1093 = vpop.f32.mrb[0].mxu0
        %v1094 = vpop.f32.mrb[0].mxu0
        %v1095 = vadd.f32 %v1006, %v1094
        %v1096 = vpop.f32.mrb[0].mxu0
        %1097 = vdwg.mxu0
        %1098 = vst.msk [vmem:[%s419] sm:$0xff] %vm450, %v1068
        %1099 = vst.msk [vmem:[%s419 + $0x8] sm:$0xff] %vm450, %v1071
        %1100 = vst.msk [vmem:[%s419 + $0x10] sm:$0xff] %vm450, %v1076
        %1101 = vst.msk [vmem:[%s419 + $0x18] sm:$0xff] %vm450, %v1079
        %1102 = vst.msk [vmem:[%s419 + $0x20] sm:$0xff] %vm450, %v1084
        %1103 = vst.msk [vmem:[%s419 + $0x28] sm:$0xff] %vm450, %v1087
        %1104 = vst.msk [vmem:[%s419 + $0x30] sm:$0xff] %vm450, %v1092
        %1105 = vst.msk [vmem:[%s419 + $0x38] sm:$0xff] %vm450, %v1095
        %s1106 = sand.u32 %s210, 1
        %s1107 = scalar_lea.sflag [#allocation4], %s1106
        %s1108 = sand.u32 %s210, 1
        %s1109 = smul.addr %s1108, 64
        %s1110 = scalar_lea.vmem [#allocation16], %s1109
        // Predicated region
        $region85: #{tpu_custom_call.1} parent=51 // pred_check
          %p1111 = pneg %p220
        $region86: #{tpu_custom_call.1} parent=51 // pred_check_branch
          %1113 = sbr.rel (%p1111) target = $region88
        $region87: #{tpu_custom_call.1} parent=51 // pred_region
          %s1114 = smul.u32 8, %s29
          %s1116 = ssub.s32 1024, 1024
          %1117 = vsyncadd %s1107, %s1116
          %s1118 = smul.addr %s1114, 128
          %s1119 = scalar_lea.hbm %s8, %s1118
          %s1120 = sshll.u32 %s1110, 4
          %s1121 = int_to_ptr.vmem [resolvable:$true] %s1120
          %1126 = dma.vmem_to_hbm [thread:$0]  %s1121, 1024, %s1119, %s1107, 128, 128, 8
        $region88: #{tpu_custom_call.1} parent=51 // pred_fallthru
          _
      $region52: #{tpu_custom_call.1} parent=5 // pred_fallthru
        _
      %p1127 = scmp.le.s32.totalorder 2, %s24
      // Predicated region
      $region89: #{tpu_custom_call.1} parent=5 // pred_check
        %p1128 = pneg %p1127
      $region90: #{tpu_custom_call.1} parent=5 // pred_check_branch
        %1130 = sbr.rel (%p1128) target = $region92
      $region91: #{tpu_custom_call.1} parent=5 // pred_region
        %s1131 = ssub.s32 %s24, 2
        // Predicated region
        $region93: #{tpu_custom_call.1} parent=91 // pred_check
          %p1132 = pneg %p226
        $region94: #{tpu_custom_call.1} parent=91 // pred_check_branch
          %1134 = sbr.rel (%p1132) target = $region96
        $region95: #{tpu_custom_call.1} parent=91 // pred_region
          %s1135 = sand.u32 %s211, 1
          %s1136 = scalar_lea.sflag [#allocation4], %s1135
          %s1137 = sand.u32 %s211, 1
          %s1138 = smul.addr %s1137, 64
          %s1139 = scalar_lea.vmem [#allocation16], %s1138
          %1140 = dma.done %s1136, 1024
        $region96: #{tpu_custom_call.1} parent=91 // pred_fallthru
          _
      $region92: #{tpu_custom_call.1} parent=5 // pred_fallthru
        _
    $region6: #{tpu_custom_call.1} parent=1 // loop_footer
      %s28 = sadd.s32 1, %s24
    $region7: #{tpu_custom_call.1} parent=1 // loop_footer_branch
      %23 = sbr.rel target = $region3
    $region8: #{tpu_custom_call.1} parent=1 // loop_exit
      _
    %1141 = vsyncpa [#allocation3], 1
    %s1142 = scalar_lea.sflag [#allocation3], 1
    %1143 = vsyncpa %s1142, 1
    %1144 = vsyncpa [#allocation6], 1
    %1145 = vsyncpa [#allocation9], 1
    %1146 = vsyncpa [#allocation12], 1
    %1147 = vsyncpa [#allocation15], 1
    %1148 = vsyncpa [#allocation4], 1
    %s1149 = scalar_lea.sflag [#allocation4], 1
    %1150 = vsyncpa %s1149, 1

</llo_original>
